<compile_context>
chip_gen: v6e
topology: v6e:2x2x1
jax: 0.10.0
libtpu: 0.0.40
codegen_flags: <defaults>
</compile_context>

<pallas_src>
import functools

import jax
import jax.numpy as jnp
from jax.experimental import pallas as pl
from jax.experimental.pallas import tpu as pltpu


# ----------------------------- generation-aware sizing -----------------------

def _tpu_vmem_capacity_bytes():
    try:
        return int(getattr(pltpu.get_tpu_info(), "vmem_capacity_bytes",
                           128 * 1024 * 1024))
    except Exception:
        return 128 * 1024 * 1024


_VMEM_CAP = _tpu_vmem_capacity_bytes()
_VMEM_LIMIT = (_VMEM_CAP * 3) // 4                 # leave headroom for compiler scratch
_MAX_TOKEN_TILE = 1024 if _VMEM_CAP >= (96 << 20) else 512


def _pick_tile(n, max_tile):
    """Largest tile <= max_tile dividing n, multiple of 8; prefer >= 2 grid steps."""
    cap = min(max_tile, n)
    cap -= cap % 8
    best = None
    t = cap
    while t >= 8:
        if n % t == 0:
            if best is None:
                best = t
            if n // t >= 2:
                return t
        t -= 8
    return best if best is not None else n


def _invariant_spec(block_shape, index_map):
    """BlockSpec for grid-invariant operands: single-buffered when supported."""
    try:
        return pl.BlockSpec(block_shape, index_map, pipeline_mode=pl.Buffered(1))
    except Exception:
        return pl.BlockSpec(block_shape, index_map)


# ----------------------------- Pallas kernels -------------------------------

def _ln_qkv_kernel(x_ref, g_ref, b_ref, w_ref, bq_ref, o_ref, z_sc):
    # grid = (token_tiles, 3); j selects the Q/K/V projection slab.
    j = pl.program_id(1)

    @pl.when(j == 0)
    def _():
        x = x_ref[...].astype(jnp.float32)
        mu = jnp.mean(x, axis=-1, keepdims=True)
        xc = x - mu
        var = jnp.mean(xc * xc, axis=-1, keepdims=True)
        z = xc * jax.lax.rsqrt(var + 1e-5) * g_ref[...] + b_ref[...]
        z_sc[...] = z.astype(z_sc.dtype)

    o = jnp.dot(z_sc[...], w_ref[0],
                preferred_element_type=jnp.float32) + bq_ref[0]
    o_ref[0] = o.astype(o_ref.dtype)


def _attention_kernel(q_ref, k_ref, v_ref, m_ref, o_ref, *, heads, scale):
    # q: [1, tq, D] bf16; k/v: [1, S, D] bf16; m: [1, tq, S] int8; o: [tq, D]
    tq, D = q_ref.shape[1], q_ref.shape[2]
    S = k_ref.shape[1]
    dk = D // heads
    q = q_ref[0].reshape(tq, heads, dk)
    k = k_ref[0].reshape(S, heads, dk)
    v = v_ref[0].reshape(S, heads, dk)
    s = jnp.einsum('qhd,khd->hqk', q, k,
                   preferred_element_type=jnp.float32) * scale
    m = m_ref[0]
    s = jnp.where((m != 0)[None, :, :], s, -1e30)       # masked_fill(mask == 0, -inf)
    s = s - jnp.max(s, axis=-1, keepdims=True)
    p = jnp.exp(s)
    p = p * pl.reciprocal(jnp.sum(p, axis=-1, keepdims=True), approx=True)
    o = jnp.einsum('hqk,khd->qhd', p.astype(jnp.bfloat16), v,
                   preferred_element_type=jnp.float32)
    o_ref[...] = o.reshape(tq, D).astype(o_ref.dtype)


def _out_proj_residual_kernel(a_ref, w_ref, b_ref, r_ref, o_ref):
    # o = residual + a @ Wo + bo  (dropout = identity in eval mode)
    y = jnp.dot(a_ref[...], w_ref[...],
                preferred_element_type=jnp.float32) + b_ref[...]
    o_ref[...] = (r_ref[...] + y).astype(o_ref.dtype)


def _router(x, g, b, sw, sb, n_experts):
    """Fused LayerNorm + router softmax; all statistics in f32."""
    mu = jnp.mean(x, axis=-1, keepdims=True)
    xc = x - mu
    var = jnp.mean(xc * xc, axis=-1, keepdims=True)
    z = xc * jax.lax.rsqrt(var + 1e-5) * g + b
    logits = jnp.dot(z, sw, preferred_element_type=jnp.float32) + sb
    lmax = jnp.max(logits, axis=-1, keepdims=True)
    ez = jnp.exp(logits - lmax)
    p = ez / jnp.sum(ez, axis=-1, keepdims=True)
    e_ids = jax.lax.broadcasted_iota(jnp.int32, logits.shape, 1)
    # first (lowest-index) argmax on logits, matching torch.max tie-breaking
    routes = jnp.min(jnp.where(logits == lmax, e_ids, n_experts),
                     axis=-1, keepdims=True)
    pmax = jnp.max(p, axis=-1, keepdims=True)
    onehot = (e_ids == routes).astype(jnp.float32)
    return z, p, routes, pmax, onehot


def _store_aux(rp_ref, cnt_ref, rpm_ref, p, onehot, pmax, n_experts):
    # per-tile reduced aux: row 0 of an [8, E] block carries the partial sums
    row0 = jax.lax.broadcasted_iota(jnp.int32, (8, n_experts), 0) == 0
    rp_ref[0] = jnp.where(row0, jnp.sum(p, axis=0, keepdims=True), 0.0)
    cnt_ref[0] = jnp.where(row0, jnp.sum(onehot, axis=0, keepdims=True), 0.0)
    rpm_ref[...] = pmax


def _maybe_final_ln(out, fg, fb, apply_final_ln):
    if apply_final_ln:
        mu = jnp.mean(out, axis=-1, keepdims=True)
        oc = out - mu
        var = jnp.mean(oc * oc, axis=-1, keepdims=True)
        out = oc * jax.lax.rsqrt(var + 1e-5) * fg + fb
    return out


def _switch_ffn_resident_kernel(x_ref, g_ref, b_ref, sw_ref, sb_ref,
                                w1_ref, b1_ref, w2_ref, b2_ref, fg_ref, fb_ref,
                                out_ref, rp_ref, cnt_ref, rpm_ref,
                                *, n_experts, apply_final_ln):
    # all expert weights resident in VMEM; grid = (token_tiles,)
    x = x_ref[...].astype(jnp.float32)
    z, p, routes, pmax, onehot = _router(x, g_ref[...], b_ref[...],
                                         sw_ref[...], sb_ref[...], n_experts)
    _store_aux(rp_ref, cnt_ref, rpm_ref, p, onehot, pmax, n_experts)

    # TODO(synk): replace dense-masked compute with routed gather per expert.
    zb = z.astype(jnp.bfloat16)
    acc = jnp.zeros(x.shape, jnp.float32)
    for e in range(n_experts):
        h = jnp.maximum(
            jnp.dot(zb, w1_ref[e], preferred_element_type=jnp.float32) + b1_ref[e],
            0.0)
        y = jnp.dot(h.astype(jnp.bfloat16), w2_ref[e],
                    preferred_element_type=jnp.float32) + b2_ref[e]
        acc = acc + jnp.where(routes == e, y, 0.0)

    out = x + acc * pmax                      # is_scale_prob=True + residual
    out = _maybe_final_ln(out, fg_ref[...], fb_ref[...], apply_final_ln)
    out_ref[...] = out.astype(out_ref.dtype)


def _switch_ffn_streamed_kernel(x_ref, g_ref, b_ref, sw_ref, sb_ref,
                                w1_ref, b1_ref, w2_ref, b2_ref, fg_ref, fb_ref,
                                out_ref, rp_ref, cnt_ref, rpm_ref,
                                z_sc, routes_sc, pmax_sc, acc_sc,
                                *, n_experts, apply_final_ln):
    # grid = (token_tiles, n_experts); expert weights streamed one at a time.
    e = pl.program_id(1)

    @pl.when(e == 0)
    def _():
        x = x_ref[...].astype(jnp.float32)
        z, p, routes, pmax, onehot = _router(x, g_ref[...], b_ref[...],
                                             sw_ref[...], sb_ref[...], n_experts)
        z_sc[...] = z.astype(z_sc.dtype)
        routes_sc[...] = routes
        pmax_sc[...] = pmax
        acc_sc[...] = jnp.zeros_like(acc_sc)
        _store_aux(rp_ref, cnt_ref, rpm_ref, p, onehot, pmax, n_experts)

    h = jnp.maximum(
        jnp.dot(z_sc[...], w1_ref[0], preferred_element_type=jnp.float32) + b1_ref[0],
        0.0)
    y = jnp.dot(h.astype(jnp.bfloat16), w2_ref[0],
                preferred_element_type=jnp.float32) + b2_ref[0]
    acc_sc[...] = acc_sc[...] + jnp.where(routes_sc[...] == e, y, 0.0)

    @pl.when(e == n_experts - 1)
    def _():
        out = x_ref[...].astype(jnp.float32) + acc_sc[...] * pmax_sc[...]
        out = _maybe_final_ln(out, fg_ref[...], fb_ref[...], apply_final_ln)
        out_ref[...] = out.astype(out_ref.dtype)


# ----------------------------- Pallas wrappers -------------------------------

def ln_qkv(x, g, b, wqkv, bqkv):
    # x: [T, D] f32; wqkv: [3, D, D] bf16; bqkv: [3, D] f32 -> qkv3 [3, T, D] bf16
    T, D = x.shape
    TM = _pick_tile(T, _MAX_TOKEN_TILE)
    nt = T // TM
    return pl.pallas_call(
        _ln_qkv_kernel,
        out_shape=jax.ShapeDtypeStruct((3, T, D), jnp.bfloat16),
        grid=(nt, 3),
        in_specs=[
            pl.BlockSpec((TM, D), lambda i, j: (i, 0)),
            _invariant_spec((1, D), lambda i, j: (0, 0)),
            _invariant_spec((1, D), lambda i, j: (0, 0)),
            pl.BlockSpec((1, D, D), lambda i, j: (j, 0, 0)),
            pl.BlockSpec((1, 1, D), lambda i, j: (j, 0, 0)),
        ],
        out_specs=pl.BlockSpec((1, TM, D), lambda i, j: (j, i, 0)),
        scratch_shapes=[pltpu.VMEM((TM, D), jnp.bfloat16)],
        compiler_params=pltpu.CompilerParams(
            dimension_semantics=("parallel", "arbitrary"),
            vmem_limit_bytes=_VMEM_LIMIT),
    )(x, g.reshape(1, D), b.reshape(1, D), wqkv, bqkv.reshape(3, 1, D))


def attention(qkv3, mask_b, *, seq, batch, heads, scale):
    # qkv3: [3, T, D] bf16 (batch-major tokens); mask_b: [B, S, S] int8
    _, T, D = qkv3.shape
    S = seq
    tq = _pick_tile(S, 256)
    nq = S // tq
    kern = functools.partial(_attention_kernel, heads=heads, scale=scale)
    return pl.pallas_call(
        kern,
        out_shape=jax.ShapeDtypeStruct((T, D), jnp.bfloat16),
        grid=(batch, nq),
        in_specs=[
            pl.BlockSpec((1, tq, D), lambda b, qi: (0, b * nq + qi, 0)),
            pl.BlockSpec((1, S, D), lambda b, qi: (1, b, 0)),
            pl.BlockSpec((1, S, D), lambda b, qi: (2, b, 0)),
            pl.BlockSpec((1, tq, S), lambda b, qi: (b, qi, 0)),
        ],
        out_specs=pl.BlockSpec((tq, D), lambda b, qi: (b * nq + qi, 0)),
        compiler_params=pltpu.CompilerParams(
            dimension_semantics=("parallel", "parallel"),
            vmem_limit_bytes=_VMEM_LIMIT),
    )(qkv3, qkv3, qkv3, mask_b)


def out_proj_residual(ao, wo, bo, residual):
    # residual + ao @ Wo + bo; residual buffer reused in place.
    T, D = ao.shape
    TM = _pick_tile(T, _MAX_TOKEN_TILE)
    nt = T // TM
    return pl.pallas_call(
        _out_proj_residual_kernel,
        out_shape=jax.ShapeDtypeStruct((T, D), jnp.float32),
        grid=(nt,),
        in_specs=[
            pl.BlockSpec((TM, D), lambda i: (i, 0)),
            _invariant_spec((D, D), lambda i: (0, 0)),
            _invariant_spec((1, D), lambda i: (0, 0)),
            pl.BlockSpec((TM, D), lambda i: (i, 0)),
        ],
        out_specs=pl.BlockSpec((TM, D), lambda i: (i, 0)),
        input_output_aliases={3: 0},
        compiler_params=pltpu.CompilerParams(
            dimension_semantics=("parallel",),
            vmem_limit_bytes=_VMEM_LIMIT),
    )(ao, wo, bo.reshape(1, D), residual)


def switch_ffn(x, g, b, sw, sb, w1, b1, w2, b2, fg, fb, *, apply_final_ln):
    T, D = x.shape
    E, _, F = w1.shape
    TM = _pick_tile(T, _MAX_TOKEN_TILE)
    nt = T // TM

    out_shapes = (
        jax.ShapeDtypeStruct((T, D), jnp.float32),    # x + scaled expert output
        jax.ShapeDtypeStruct((nt, 8, E), jnp.float32),  # partial route_prob sums
        jax.ShapeDtypeStruct((nt, 8, E), jnp.float32),  # partial counts
        jax.ShapeDtypeStruct((T, 1), jnp.float32),    # route_prob_max
    )
    b1r, b2r = b1.reshape(E, 1, F), b2.reshape(E, 1, D)
    gr, br = g.reshape(1, D), b.reshape(1, D)
    sbr = sb.reshape(1, E)
    fgr, fbr = fg.reshape(1, D), fb.reshape(1, D)

    expert_bytes = 2 * E * (D * F + F * D) + 4 * E * (F + D)
    resident = expert_bytes <= _VMEM_LIMIT // 4

    if resident:
        kern = functools.partial(_switch_ffn_resident_kernel,
                                 n_experts=E, apply_final_ln=apply_final_ln)
        grid = (nt,)
        in_specs = [
            pl.BlockSpec((TM, D), lambda i: (i, 0)),
            _invariant_spec((1, D), lambda i: (0, 0)),
            _invariant_spec((1, D), lambda i: (0, 0)),
            _invariant_spec((D, E), lambda i: (0, 0)),
            _invariant_spec((1, E), lambda i: (0, 0)),
            _invariant_spec((E, D, F), lambda i: (0, 0, 0)),
            _invariant_spec((E, 1, F), lambda i: (0, 0, 0)),
            _invariant_spec((E, F, D), lambda i: (0, 0, 0)),
            _invariant_spec((E, 1, D), lambda i: (0, 0, 0)),
            _invariant_spec((1, D), lambda i: (0, 0)),
            _invariant_spec((1, D), lambda i: (0, 0)),
        ]
        out_specs = (
            pl.BlockSpec((TM, D), lambda i: (i, 0)),
            pl.BlockSpec((1, 8, E), lambda i: (i, 0, 0)),
            pl.BlockSpec((1, 8, E), lambda i: (i, 0, 0)),
            pl.BlockSpec((TM, 1), lambda i: (i, 0)),
        )
        scratch = []
        dims = ("parallel",)
    else:
        kern = functools.partial(_switch_ffn_streamed_kernel,
                                 n_experts=E, apply_final_ln=apply_final_ln)
        grid = (nt, E)
        in_specs = [
            pl.BlockSpec((TM, D), lambda i, e: (i, 0)),
            _invariant_spec((1, D), lambda i, e: (0, 0)),
            _invariant_spec((1, D), lambda i, e: (0, 0)),
            _invariant_spec((D, E), lambda i, e: (0, 0)),
            _invariant_spec((1, E), lambda i, e: (0, 0)),
            pl.BlockSpec((1, D, F), lambda i, e: (e, 0, 0)),   # stream expert e
            pl.BlockSpec((1, 1, F), lambda i, e: (e, 0, 0)),
            pl.BlockSpec((1, F, D), lambda i, e: (e, 0, 0)),
            pl.BlockSpec((1, 1, D), lambda i, e: (e, 0, 0)),
            _invariant_spec((1, D), lambda i, e: (0, 0)),
            _invariant_spec((1, D), lambda i, e: (0, 0)),
        ]
        out_specs = (
            pl.BlockSpec((TM, D), lambda i, e: (i, 0)),
            pl.BlockSpec((1, 8, E), lambda i, e: (i, 0, 0)),
            pl.BlockSpec((1, 8, E), lambda i, e: (i, 0, 0)),
            pl.BlockSpec((TM, 1), lambda i, e: (i, 0)),
        )
        scratch = [
            pltpu.VMEM((TM, D), jnp.bfloat16),   # LN output (MXU input)
            pltpu.VMEM((TM, 1), jnp.int32),      # routes
            pltpu.VMEM((TM, 1), jnp.float32),    # route_prob_max
            pltpu.VMEM((TM, D), jnp.float32),    # accumulator
        ]
        dims = ("parallel", "arbitrary")

    return pl.pallas_call(
        kern,
        out_shape=out_shapes,
        grid=grid,
        in_specs=in_specs,
        out_specs=out_specs,
        scratch_shapes=scratch,
        input_output_aliases={0: 0},
        compiler_params=pltpu.CompilerParams(
            dimension_semantics=dims, vmem_limit_bytes=_VMEM_LIMIT),
    )(x, gr, br, sw, sbr, w1, b1r, w2, b2r, fgr, fbr)


# ----------------------------- Model forward ---------------------------------

def switch_transformer_forward(x, mask, params, *, heads):
    """x: [seq, batch, d_model]; mask: [seq_q, seq_k, batch] (non-zero = attend)."""
    seq, batch, d_model = x.shape
    d_k = d_model // heads
    scale = 1.0 / (d_k ** 0.5)
    n_layers = len(params["layers"])

    # batch-major token layout keeps the head split inside attention BlockSpecs
    xt = jnp.transpose(x, (1, 0, 2)).reshape(batch * seq, d_model).astype(jnp.float32)
    mask_b = (jnp.transpose(mask, (2, 0, 1)) != 0).astype(jnp.int8)

    counts_all, rp_all, nd_all, rpm_all = [], [], [], []
    for li, lp in enumerate(params["layers"]):
        # ---- self-attention sublayer (pre-norm, LN + QKV fused) ----
        qkv3 = ln_qkv(xt, lp["ln1_g"], lp["ln1_b"], lp["Wqkv"], lp["bqkv"])
        ao = attention(qkv3, mask_b, seq=seq, batch=batch, heads=heads, scale=scale)
        xt = out_proj_residual(ao, lp["Wo"], lp["bo"], xt)

        # ---- switch feed-forward sublayer (LN2 + router + experts + residual;
        #      the model's final LayerNorm is fused into the last layer) ----
        is_last = li == n_layers - 1
        xt, rp_part, cnt_part, rpm = switch_ffn(
            xt, lp["ln2_g"], lp["ln2_b"], lp["switch_w"], lp["switch_b"],
            lp["w1"], lp["b1"], lp["w2"], lp["b2"],
            params["final_g"], params["final_b"], apply_final_ln=is_last)

        counts_all.append(jnp.sum(cnt_part, axis=(0, 1)))      # counts [E]
        rp_all.append(jnp.sum(rp_part, axis=(0, 1)))           # route_prob.sum(0)
        # back to torch token order (seq-major): row = s*batch + b
        rpm_all.append(rpm[:, 0].reshape(batch, seq).T.reshape(-1))
        nd_all.append(0)                                        # drop_tokens=False

    x_out = jnp.transpose(xt.reshape(batch, seq, d_model), (1, 0, 2))
    return (x_out,
            jnp.stack(counts_all),      # [n_layers, n_experts]
            jnp.stack(rp_all),          # [n_layers, n_experts]
            nd_all,                     # python list of n_dropped per layer
            jnp.stack(rpm_all))         # [n_layers, seq*batch]


# ----------------------------- Parameter init --------------------------------

def init_params(key, *, n_layers, d_model, heads, d_ff, n_experts):
    def nrm(k, shape, dtype=jnp.float32, s=0.05):
        return (s * jax.random.normal(k, shape)).astype(dtype)

    layers = []
    for _ in range(n_layers):
        key, *ks = jax.random.split(key, 15)
        Wq = nrm(ks[0], (d_model, d_model))
        Wk = nrm(ks[1], (d_model, d_model))
        Wv = nrm(ks[2], (d_model, d_model))
        bq = nrm(ks[3], (d_model,))
        bk = nrm(ks[4], (d_model,))
        bv = nrm(ks[5], (d_model,))
        lp = dict(
            ln1_g=jnp.ones((d_model,), jnp.float32),
            ln1_b=jnp.zeros((d_model,), jnp.float32),
            ln2_g=jnp.ones((d_model,), jnp.float32),
            ln2_b=jnp.zeros((d_model,), jnp.float32),
            Wqkv=jnp.stack([Wq, Wk, Wv], axis=0).astype(jnp.bfloat16),  # [3, D, D]
            bqkv=jnp.stack([bq, bk, bv], axis=0),                        # [3, D]
            Wo=nrm(ks[6], (d_model, d_model), jnp.bfloat16),
            bo=nrm(ks[7], (d_model,)),
            switch_w=nrm(ks[8], (d_model, n_experts)),
            switch_b=nrm(ks[9], (n_experts,)),
            w1=nrm(ks[10], (n_experts, d_model, d_ff), jnp.bfloat16),
            b1=nrm(ks[11], (n_experts, d_ff)),
            w2=nrm(ks[12], (n_experts, d_ff, d_model), jnp.bfloat16),
            b2=nrm(ks[13], (n_experts, d_model)),
        )
        layers.append(lp)
    return dict(
        layers=layers,
        final_g=jnp.ones((d_model,), jnp.float32),
        final_b=jnp.zeros((d_model,), jnp.float32),
    )


# ----------------------------- Main ------------------------------------------

if __name__ == "__main__":
    seq, batch, d_model = 8, 2, 32
    heads, d_ff, n_experts, n_layers = 4, 64, 4, 2

    key = jax.random.PRNGKey(0)
    kx, kp = jax.random.split(key)
    x = jax.random.normal(kx, (seq, batch, d_model), jnp.float32)
    # causal (subsequent) mask, shape [seq_q, seq_k, batch], 1 = attend
    mask = jnp.broadcast_to(
        jnp.tril(jnp.ones((seq, seq), jnp.float32))[:, :, None], (seq, seq, batch))

    params = init_params(kp, n_layers=n_layers, d_model=d_model, heads=heads,
                         d_ff=d_ff, n_experts=n_experts)

    out, counts, route_prob, n_dropped, route_prob_max = switch_transformer_forward(
        x, mask, params, heads=heads)

    jax.block_until_ready(out)
    jax.block_until_ready(counts)
    jax.block_until_ready(route_prob)
    jax.block_until_ready(route_prob_max)

    assert out.shape == (seq, batch, d_model)
    assert counts.shape == (n_layers, n_experts)
    assert route_prob.shape == (n_layers, n_experts)
    assert route_prob_max.shape == (n_layers, seq * batch)
    assert len(n_dropped) == n_layers
    assert bool(jnp.all(jnp.isfinite(out)))
    # every token is routed exactly once (drop_tokens=False)
    assert bool(jnp.allclose(jnp.sum(counts, axis=-1), seq * batch))

    print("KERNEL_OK")
</pallas_src>

<mosaic_0001>
module attributes {stable_mosaic.version = 11 : i64} {
  func.func @_ln_qkv_kernel(%arg0: i32, %arg1: i32, %arg2: memref<8x32xf32, #tpu.memory_space<vmem>>, %arg3: memref<1x32xf32, #tpu.memory_space<vmem>>, %arg4: memref<1x32xf32, #tpu.memory_space<vmem>>, %arg5: memref<1x32x32xbf16, #tpu.memory_space<vmem>>, %arg6: memref<1x1x32xf32, #tpu.memory_space<vmem>>, %arg7: memref<1x8x32xbf16, #tpu.memory_space<vmem>>, %arg8: memref<8x32xbf16, #tpu.memory_space<vmem>>) attributes {dimension_semantics = [#tpu.dimension_semantics<parallel>, #tpu.dimension_semantics<arbitrary>], iteration_bounds = array<i64: 2, 3>, scalar_prefetch = 0 : i64, scratch_operands = 1 : i64, tpu.core_type = #tpu.core_type<tc>, window_params = [{transform_indices = @transform_0, window_bounds = array<i64: 8, 32>}, {pipeline_mode = #tpu.pipeline_mode<synchronous>, transform_indices = @transform_1, window_bounds = array<i64: 1, 32>}, {pipeline_mode = #tpu.pipeline_mode<synchronous>, transform_indices = @transform_2, window_bounds = array<i64: 1, 32>}, {transform_indices = @transform_3, window_bounds = array<i64: 1, 32, 32>}, {transform_indices = @transform_4, window_bounds = array<i64: 1, 1, 32>}, {transform_indices = @transform_5, window_bounds = array<i64: 1, 8, 32>}]} {
    %c0_i32 = arith.constant 0 : i32
    %0 = arith.cmpi eq, %arg1, %c0_i32 : i32
    %1 = arith.extui %0 : i1 to i32
    %c0_i32_0 = arith.constant 0 : i32
    %2 = arith.cmpi ne, %1, %c0_i32_0 : i32
    scf.if %2 {
      %c0_11 = arith.constant 0 : index
      %c0_12 = arith.constant 0 : index
      %15 = vector.load %arg2[%c0_11, %c0_12] : memref<8x32xf32, #tpu.memory_space<vmem>>, vector<8x32xf32>
      %cst_13 = arith.constant dense<0.000000e+00> : vector<8xf32>
      %16 = vector.multi_reduction <add>, %15, %cst_13 [1] : vector<8x32xf32> to vector<8xf32>
      %17 = vector.shape_cast %16 : vector<8xf32> to vector<8x1xf32>
      %cst_14 = arith.constant 3.200000e+01 : f32
      %18 = vector.broadcast %cst_14 : f32 to vector<8x1xf32>
      %19 = arith.divf %17, %18 : vector<8x1xf32>
      %20 = vector.broadcast %19 : vector<8x1xf32> to vector<8x32xf32>
      %21 = arith.subf %15, %20 : vector<8x32xf32>
      %22 = arith.mulf %21, %21 : vector<8x32xf32>
      %cst_15 = arith.constant dense<0.000000e+00> : vector<8xf32>
      %23 = vector.multi_reduction <add>, %22, %cst_15 [1] : vector<8x32xf32> to vector<8xf32>
      %24 = vector.shape_cast %23 : vector<8xf32> to vector<8x1xf32>
      %cst_16 = arith.constant 3.200000e+01 : f32
      %25 = vector.broadcast %cst_16 : f32 to vector<8x1xf32>
      %26 = arith.divf %24, %25 : vector<8x1xf32>
      %cst_17 = arith.constant 9.99999974E-6 : f32
      %27 = vector.broadcast %cst_17 : f32 to vector<8x1xf32>
      %28 = arith.addf %26, %27 : vector<8x1xf32>
      %29 = math.rsqrt %28 : vector<8x1xf32>
      %30 = vector.broadcast %29 : vector<8x1xf32> to vector<8x32xf32>
      %31 = arith.mulf %21, %30 : vector<8x32xf32>
      %c0_18 = arith.constant 0 : index
      %c0_19 = arith.constant 0 : index
      %32 = vector.load %arg3[%c0_18, %c0_19] : memref<1x32xf32, #tpu.memory_space<vmem>>, vector<1x32xf32>
      %33 = vector.broadcast %32 : vector<1x32xf32> to vector<8x32xf32>
      %34 = arith.mulf %31, %33 : vector<8x32xf32>
      %c0_20 = arith.constant 0 : index
      %c0_21 = arith.constant 0 : index
      %35 = vector.load %arg4[%c0_20, %c0_21] : memref<1x32xf32, #tpu.memory_space<vmem>>, vector<1x32xf32>
      %36 = vector.broadcast %35 : vector<1x32xf32> to vector<8x32xf32>
      %37 = arith.addf %34, %36 : vector<8x32xf32>
      %38 = arith.truncf %37 : vector<8x32xf32> to vector<8x32xbf16>
      %c0_22 = arith.constant 0 : index
      %c0_23 = arith.constant 0 : index
      %39 = vector.load %arg8[%c0_22, %c0_23] : memref<8x32xbf16, #tpu.memory_space<vmem>>, vector<8x32xbf16>
      tpu.vector_store %arg8[%c0_22, %c0_23], %38 {strides = array<i32>} : memref<8x32xbf16, #tpu.memory_space<vmem>>, vector<8x32xbf16>,
    } else {
    }
    %c0 = arith.constant 0 : index
    %c0_1 = arith.constant 0 : index
    %3 = vector.load %arg8[%c0, %c0_1] : memref<8x32xbf16, #tpu.memory_space<vmem>>, vector<8x32xbf16>
    %c0_2 = arith.constant 0 : index
    %c0_3 = arith.constant 0 : index
    %c0_4 = arith.constant 0 : index
    %4 = vector.load %arg5[%c0_2, %c0_3, %c0_4] : memref<1x32x32xbf16, #tpu.memory_space<vmem>>, vector<1x32x32xbf16>
    %5 = vector.shape_cast %4 : vector<1x32x32xbf16> to vector<32x32xbf16>
    %cst = arith.constant dense<0.000000e+00> : vector<8x32xf32>
    %6 = tpu.matmul %3, %5, %cst {dimension_numbers = #tpu.dot_dimension_numbers<[1], [0], [0], [1], [0, 0, 1, 1], [], []>} : vector<8x32xbf16>, vector<32x32xbf16>, vector<8x32xf32> -> vector<8x32xf32>
    %c0_5 = arith.constant 0 : index
    %c0_6 = arith.constant 0 : index
    %c0_7 = arith.constant 0 : index
    %7 = vector.load %arg6[%c0_5, %c0_6, %c0_7] : memref<1x1x32xf32, #tpu.memory_space<vmem>>, vector<1x1x32xf32>
    %8 = vector.shape_cast %7 : vector<1x1x32xf32> to vector<1x32xf32>
    %9 = vector.broadcast %8 : vector<1x32xf32> to vector<8x32xf32>
    %10 = arith.addf %6, %9 : vector<8x32xf32>
    %11 = arith.truncf %10 : vector<8x32xf32> to vector<8x32xbf16>
    %c0_8 = arith.constant 0 : index
    %c0_9 = arith.constant 0 : index
    %c0_10 = arith.constant 0 : index
    %12 = vector.load %arg7[%c0_8, %c0_9, %c0_10] : memref<1x8x32xbf16, #tpu.memory_space<vmem>>, vector<1x8x32xbf16>
    %13 = vector.shape_cast %12 : vector<1x8x32xbf16> to vector<8x32xbf16>
    %14 = vector.shape_cast %11 : vector<8x32xbf16> to vector<1x8x32xbf16>
    tpu.vector_store %arg7[%c0_8, %c0_9, %c0_10], %14 {strides = array<i32>} : memref<1x8x32xbf16, #tpu.memory_space<vmem>>, vector<1x8x32xbf16>,
    return
  }
  func.func @transform_0(%arg0: i32, %arg1: i32) -> (i32, i32) {
    %c0_i32 = arith.constant 0 : i32
    %c0_i32_0 = arith.constant 0 : i32
    return %arg0, %c0_i32 : i32, i32
  }
  func.func @transform_1(%arg0: i32, %arg1: i32) -> (i32, i32) {
    %c0_i32 = arith.constant 0 : i32
    %c0_i32_0 = arith.constant 0 : i32
    %c0_i32_1 = arith.constant 0 : i32
    return %c0_i32, %c0_i32_0 : i32, i32
  }
  func.func @transform_2(%arg0: i32, %arg1: i32) -> (i32, i32) {
    %c0_i32 = arith.constant 0 : i32
    %c0_i32_0 = arith.constant 0 : i32
    %c0_i32_1 = arith.constant 0 : i32
    return %c0_i32, %c0_i32_0 : i32, i32
  }
  func.func @transform_3(%arg0: i32, %arg1: i32) -> (i32, i32, i32) {
    %c0_i32 = arith.constant 0 : i32
    %c0_i32_0 = arith.constant 0 : i32
    %c0_i32_1 = arith.constant 0 : i32
    return %arg1, %c0_i32, %c0_i32_0 : i32, i32, i32
  }
  func.func @transform_4(%arg0: i32, %arg1: i32) -> (i32, i32, i32) {
    %c0_i32 = arith.constant 0 : i32
    %c0_i32_0 = arith.constant 0 : i32
    %c0_i32_1 = arith.constant 0 : i32
    return %arg1, %c0_i32, %c0_i32_0 : i32, i32, i32
  }
  func.func @transform_5(%arg0: i32, %arg1: i32) -> (i32, i32, i32) {
    %c0_i32 = arith.constant 0 : i32
    %c0_i32_0 = arith.constant 0 : i32
    return %arg1, %arg0, %c0_i32 : i32, i32, i32
  }
}

</mosaic_0001>

<llo_original>
// kernel: tpu_custom_call.1
$region0: #{tpu_custom_call.1}
  #allocation0 [shape = 'u32[]', space=smem, size = 0x4, offset = 0x4, fixed_abs, tag = 'smem constant byte address 0x4 - core index']
  #allocation1 [shape = 'u32[144,128]{1,0:T(1,128)}', space=vmem, size = 0x12000, scoped, tag = 'internal scratch']
  #allocation2 [shape = 'bf16[8,32]{1,0:T(8,128)(2,1)}', space=vmem, size = 0x800, scoped, tag = 'scratch operand']
  %s0 = inlined_call_operand.hbm [shape: f32[16,32], index: 0, kind: input, shape index: {}]
  %s1 = inlined_call_operand.vmem [shape: f32[1,32], index: 1, kind: input, shape index: {}]
  %s2 = inlined_call_operand.vmem [shape: f32[1,32], index: 2, kind: input, shape index: {}]
  %s3 = inlined_call_operand.hbm [shape: bf16[3,32,32], index: 3, kind: input, shape index: {}]
  %s4 = inlined_call_operand.vmem [shape: f32[3,1,32], index: 4, kind: input, shape index: {}]
  %s5 = inlined_call_operand.hbm [shape: bf16[3,16,32], index: 5, kind: output, shape index: {}]
  %s6 = sld [smem:[#allocation0]]
  $region65: #{tpu_custom_call.1} parent=0
    _
  %s8 = ssub.s32 1, %s6
  %s9 = scalar_select 0, %s8, %s6
  $region1: #{tpu_custom_call.1} parent=0
    #allocation3 [shape = 'u8[8192]{0}', space=vmem, size = 0x2000, scoped, tag = 'input window, operand 0']
    #allocation4 [shape = 's32[2]{0}', space=sflag, size = 0x8, scoped, tag = 'scoped memory for tpu_custom_call.1']
    #allocation5 [shape = 's32[2]{0}', space=sflag, size = 0x8, scoped, tag = 'scoped memory for tpu_custom_call.1']
    #allocation6 [shape = 'u8[16384]{0}', space=vmem, size = 0x4000, scoped, tag = 'input window, operand 3']
    #allocation7 [shape = 's32[2]{0}', space=sflag, size = 0x8, scoped, tag = 'scoped memory for tpu_custom_call.1']
    #allocation8 [shape = 'u8[4096]{0}', space=vmem, size = 0x1000, scoped, tag = 'output window, operand 0']
    %10 = vsyncpa [#allocation4], 0
    %s11 = scalar_lea.sflag [#allocation4], 1
    %12 = vsyncpa %s11, 0
    %13 = vsyncpa [#allocation7], 0
    %s14 = scalar_lea.sflag [#allocation7], 1
    %15 = vsyncpa %s14, 0
    %16 = vsyncpa [#allocation5], 0
    %s17 = scalar_lea.sflag [#allocation5], 1
    %18 = vsyncpa %s17, 0
    loop: start=0, step=1, limit=8
    $region2: #{tpu_custom_call.1} parent=1 // loop_pre_header
      _
    $region3: #{tpu_custom_call.1} parent=1 // loop_header
      %s20 = sphi 0, %s24
      %p21 = scmp.ge.s32.totalorder %s20, 8
      %s27 = sphi 0, %s39
      %s28 = sphi 0, %s35
      %s29 = sphi 0, %s27
      %s30 = sphi 0, %s28
      %s31 = sphi 0, %s29
      %s32 = sphi 0, %s30
      %s42 = sphi 0, %s44
      %s45 = sphi 0, %s42
      %s46 = sphi 0, %s45
      %s62 = sphi 0, %s46
      %s66 = sphi 0, %s66
      %s68 = sphi 0, %s66
      %s69 = sphi 0, %s68
      %s83 = sphi 0, %s69
      %s87 = sphi 0, %s87
      %s89 = sphi 0, %s87
      %s90 = sphi 0, %s89
      %s104 = sphi 0, %s90
      %s110 = sphi 0, %s112
      %s113 = sphi 0, %s110
      %s114 = sphi 0, %s113
      %s130 = sphi 0, %s114
      %s136 = sphi 0, %s138
      %s139 = sphi 0, %s136
      %s140 = sphi 0, %s139
      %s156 = sphi 0, %s140
      %s164 = sphi 0, %s166
      %s167 = sphi 0, %s164
      %s168 = sphi 0, %s167
      %s184 = sphi 0, %s168
    $region4: #{tpu_custom_call.1} parent=1 // loop_header_branch
      %23 = sbr.rel (%p21) target = $region8
    $region5: #{tpu_custom_call.1} parent=1 // loop_body
      %s25 = ssub.s32 %s20, 1
      %s26 = ssub.s32 %s20, 2
      %s33 = sadd.s32 1, %s28
      %p34 = scmp.ge.s32.totalorder %s33, 3
      %s35 = scalar_select %p34, 0, %s33
      %s36 = sadd.s32 1, %s27
      %s37 = scalar_select %p34, %s36, %s27
      %p38 = scmp.ge.s32.totalorder %s37, 2
      %s39 = scalar_select %p38, 0, %s37
      %s40 = ssub.s32 %s27, %s39
      %p41 = scmp.eq.s32.totalorder %s40, 0
      %s43 = sadd.s32 %s42, 1
      %s44 = scalar_select %p41, %s42, %s43
      %p47 = pneg %p41
      %p48 = scmp.eq.s32.totalorder %s20, 5
      %p49 = por %p47, %p48
      %p50 = scmp.ne.s32.totalorder %s42, %s45
      %p51 = scmp.eq.s32.totalorder %s20, 0
      %p52 = por %p50, %p51
      %p53 = scmp.ne.s32.totalorder %s42, %s45
      %p54 = scmp.eq.s32.totalorder %s25, 5
      %p55 = por %p53, %p54
      %p56 = scmp.ne.s32.totalorder %s45, %s46
      %p57 = scmp.eq.s32.totalorder %s25, 0
      %p58 = por %p56, %p57
      %p59 = scmp.ne.s32.totalorder %s45, %s46
      %p60 = scmp.eq.s32.totalorder %s26, 5
      %p61 = por %p59, %p60
      %p63 = scmp.ne.s32.totalorder %s46, %s62
      %p64 = scmp.eq.s32.totalorder %s26, 0
      %p65 = por %p63, %p64
      %s67 = sadd.s32 %s66, 1
      %p70 = scmp.eq.s32.totalorder %s20, 5
      %p71 = scmp.ne.s32.totalorder %s66, %s68
      %p72 = scmp.eq.s32.totalorder %s20, 0
      %p73 = por %p71, %p72
      %p74 = scmp.ne.s32.totalorder %s66, %s68
      %p75 = scmp.eq.s32.totalorder %s25, 5
      %p76 = por %p74, %p75
      %p77 = scmp.ne.s32.totalorder %s68, %s69
      %p78 = scmp.eq.s32.totalorder %s25, 0
      %p79 = por %p77, %p78
      %p80 = scmp.ne.s32.totalorder %s68, %s69
      %p81 = scmp.eq.s32.totalorder %s26, 5
      %p82 = por %p80, %p81
      %p84 = scmp.ne.s32.totalorder %s69, %s83
      %p85 = scmp.eq.s32.totalorder %s26, 0
      %p86 = por %p84, %p85
      %s88 = sadd.s32 %s87, 1
      %p91 = scmp.eq.s32.totalorder %s20, 5
      %p92 = scmp.ne.s32.totalorder %s87, %s89
      %p93 = scmp.eq.s32.totalorder %s20, 0
      %p94 = por %p92, %p93
      %p95 = scmp.ne.s32.totalorder %s87, %s89
      %p96 = scmp.eq.s32.totalorder %s25, 5
      %p97 = por %p95, %p96
      %p98 = scmp.ne.s32.totalorder %s89, %s90
      %p99 = scmp.eq.s32.totalorder %s25, 0
      %p100 = por %p98, %p99
      %p101 = scmp.ne.s32.totalorder %s89, %s90
      %p102 = scmp.eq.s32.totalorder %s26, 5
      %p103 = por %p101, %p102
      %p105 = scmp.ne.s32.totalorder %s90, %s104
      %p106 = scmp.eq.s32.totalorder %s26, 0
      %p107 = por %p105, %p106
      %s108 = ssub.s32 %s28, %s35
      %p109 = scmp.eq.s32.totalorder %s108, 0
      %s111 = sadd.s32 %s110, 1
      %s112 = scalar_select %p109, %s110, %s111
      %p115 = pneg %p109
      %p116 = scmp.eq.s32.totalorder %s20, 5
      %p117 = por %p115, %p116
      %p118 = scmp.ne.s32.totalorder %s110, %s113
      %p119 = scmp.eq.s32.totalorder %s20, 0
      %p120 = por %p118, %p119
      %p121 = scmp.ne.s32.totalorder %s110, %s113
      %p122 = scmp.eq.s32.totalorder %s25, 5
      %p123 = por %p121, %p122
      %p124 = scmp.ne.s32.totalorder %s113, %s114
      %p125 = scmp.eq.s32.totalorder %s25, 0
      %p126 = por %p124, %p125
      %p127 = scmp.ne.s32.totalorder %s113, %s114
      %p128 = scmp.eq.s32.totalorder %s26, 5
      %p129 = por %p127, %p128
      %p131 = scmp.ne.s32.totalorder %s114, %s130
      %p132 = scmp.eq.s32.totalorder %s26, 0
      %p133 = por %p131, %p132
      %s134 = ssub.s32 %s28, %s35
      %p135 = scmp.eq.s32.totalorder %s134, 0
      %s137 = sadd.s32 %s136, 1
      %s138 = scalar_select %p135, %s136, %s137
      %p141 = pneg %p135
      %p142 = scmp.eq.s32.totalorder %s20, 5
      %p143 = por %p141, %p142
      %p144 = scmp.ne.s32.totalorder %s136, %s139
      %p145 = scmp.eq.s32.totalorder %s20, 0
      %p146 = por %p144, %p145
      %p147 = scmp.ne.s32.totalorder %s136, %s139
      %p148 = scmp.eq.s32.totalorder %s25, 5
      %p149 = por %p147, %p148
      %p150 = scmp.ne.s32.totalorder %s139, %s140
      %p151 = scmp.eq.s32.totalorder %s25, 0
      %p152 = por %p150, %p151
      %p153 = scmp.ne.s32.totalorder %s139, %s140
      %p154 = scmp.eq.s32.totalorder %s26, 5
      %p155 = por %p153, %p154
      %p157 = scmp.ne.s32.totalorder %s140, %s156
      %p158 = scmp.eq.s32.totalorder %s26, 0
      %p159 = por %p157, %p158
      %s160 = ssub.s32 %s28, %s35
      %s161 = ssub.s32 %s27, %s39
      %s162 = sor.u32 %s160, %s161
      %p163 = scmp.eq.s32.totalorder %s162, 0
      %s165 = sadd.s32 %s164, 1
      %s166 = scalar_select %p163, %s164, %s165
      %p169 = pneg %p163
      %p170 = scmp.eq.s32.totalorder %s20, 5
      %p171 = por %p169, %p170
      %p172 = scmp.ne.s32.totalorder %s164, %s167
      %p173 = scmp.eq.s32.totalorder %s20, 0
      %p174 = por %p172, %p173
      %p175 = scmp.ne.s32.totalorder %s164, %s167
      %p176 = scmp.eq.s32.totalorder %s25, 5
      %p177 = por %p175, %p176
      %p178 = scmp.ne.s32.totalorder %s167, %s168
      %p179 = scmp.eq.s32.totalorder %s25, 0
      %p180 = por %p178, %p179
      %p181 = scmp.ne.s32.totalorder %s167, %s168
      %p182 = scmp.eq.s32.totalorder %s26, 5
      %p183 = por %p181, %p182
      %p185 = scmp.ne.s32.totalorder %s168, %s184
      %p186 = scmp.eq.s32.totalorder %s26, 0
      %p187 = por %p185, %p186
      %p188 = scmp.le.s32.totalorder 1, %s20
      %p189 = scmp.lt.s32.totalorder %s20, 7
      %p190 = pnand %p188, %p189
      %p191 = pneg %p190
      // Predicated region
      $region9: #{tpu_custom_call.1} parent=5 // pred_check
        _
      $region10: #{tpu_custom_call.1} parent=5 // pred_check_branch
        %193 = sbr.rel (%p190) target = $region12
      $region11: #{tpu_custom_call.1} parent=5 // pred_region
        %s194 = ssub.s32 %s20, 1
        // Predicated region
        $region13: #{tpu_custom_call.1} parent=11 // pred_check
          %p195 = pneg %p79
        $region14: #{tpu_custom_call.1} parent=11 // pred_check_branch
          %197 = sbr.rel (%p195) target = $region16
        $region15: #{tpu_custom_call.1} parent=11 // pred_region
          _
        $region16: #{tpu_custom_call.1} parent=11 // pred_fallthru
          _
        // Predicated region
        $region17: #{tpu_custom_call.1} parent=11 // pred_check
          %p198 = pneg %p100
        $region18: #{tpu_custom_call.1} parent=11 // pred_check_branch
          %200 = sbr.rel (%p198) target = $region20
        $region19: #{tpu_custom_call.1} parent=11 // pred_region
          _
        $region20: #{tpu_custom_call.1} parent=11 // pred_fallthru
          _
      $region12: #{tpu_custom_call.1} parent=5 // pred_fallthru
        _
      %p201 = scmp.lt.s32.totalorder %s20, 6
      // Predicated region
      $region21: #{tpu_custom_call.1} parent=5 // pred_check
        %p202 = pneg %p201
      $region22: #{tpu_custom_call.1} parent=5 // pred_check_branch
        %204 = sbr.rel (%p202) target = $region24
      $region23: #{tpu_custom_call.1} parent=5 // pred_region
        // Predicated region
        $region25: #{tpu_custom_call.1} parent=23 // pred_check
          %p205 = pneg %p52
        $region26: #{tpu_custom_call.1} parent=23 // pred_check_branch
          %207 = sbr.rel (%p205) target = $region28
        $region27: #{tpu_custom_call.1} parent=23 // pred_region
          %s208 = sand.u32 %s42, 1
          %s209 = scalar_lea.sflag [#allocation4], %s208
          %s210 = sand.u32 %s42, 1
          %s211 = smul.addr %s210, 8
          %s212 = scalar_lea.vmem [#allocation3], %s211
          %s214 = ssub.s32 128, 128
          %215 = vsyncadd %s209, %s214
          %s216 = smul.addr %s27, 128
          %s217 = scalar_lea.hbm %s0, %s216
          %s219 = sshll.u32 %s212, 4
          %s220 = int_to_ptr.vmem [resolvable:$true] %s219
          %222 = dma.hbm_to_vmem [thread:$0]  %s217, 128, %s220, %s209
        $region28: #{tpu_custom_call.1} parent=23 // pred_fallthru
          _
        // Predicated region
        $region29: #{tpu_custom_call.1} parent=23 // pred_check
          %p223 = pneg %p120
        $region30: #{tpu_custom_call.1} parent=23 // pred_check_branch
          %225 = sbr.rel (%p223) target = $region32
        $region31: #{tpu_custom_call.1} parent=23 // pred_region
          %s226 = sand.u32 %s110, 1
          %s227 = scalar_lea.sflag [#allocation7], %s226
          %s228 = sand.u32 %s110, 1
          %s229 = smul.addr %s228, 16
          %s230 = scalar_lea.vmem [#allocation6], %s229
          %s232 = ssub.s32 256, 256
          %233 = vsyncadd %s227, %s232
          %s234 = smul.addr %s28, 4
          %s235 = smul.addr %s234, 64
          %s236 = scalar_lea.hbm %s3, %s235
          %s237 = sshll.u32 %s230, 4
          %s238 = int_to_ptr.vmem [resolvable:$true] %s237
          %243 = dma.hbm_to_vmem [thread:$0]  %s236, 256, %s238, %s227, 64, 64, 4
        $region32: #{tpu_custom_call.1} parent=23 // pred_fallthru
          _
        // Predicated region
        $region33: #{tpu_custom_call.1} parent=23 // pred_check
          %p244 = pneg %p146
        $region34: #{tpu_custom_call.1} parent=23 // pred_check_branch
          %246 = sbr.rel (%p244) target = $region36
        $region35: #{tpu_custom_call.1} parent=23 // pred_region
          %p247 = scmp.lt.s32.totalorder %s28, 2
          %s248 = scalar_select %p247, %s28, 2
          %s249 = scalar_lea.vmem %s4, %s248
        $region36: #{tpu_custom_call.1} parent=23 // pred_fallthru
          _
      $region24: #{tpu_custom_call.1} parent=5 // pred_fallthru
        _
      %p250 = scmp.le.s32.totalorder 1, %s20
      %p251 = scmp.lt.s32.totalorder %s20, 7
      %p252 = pnand %p250, %p251
      %p253 = pneg %p252
      // Predicated region
      $region37: #{tpu_custom_call.1} parent=5 // pred_check
        _
      $region38: #{tpu_custom_call.1} parent=5 // pred_check_branch
        %255 = sbr.rel (%p252) target = $region40
      $region39: #{tpu_custom_call.1} parent=5 // pred_region
        %s256 = ssub.s32 %s20, 1
        %s257 = sand.u32 %s45, 1
        %s258 = scalar_lea.sflag [#allocation4], %s257
        %s259 = sand.u32 %s45, 1
        %s260 = smul.addr %s259, 8
        %s261 = scalar_lea.vmem [#allocation3], %s260
        // Predicated region
        $region41: #{tpu_custom_call.1} parent=39 // pred_check
          %p262 = pneg %p58
        $region42: #{tpu_custom_call.1} parent=39 // pred_check_branch
          %264 = sbr.rel (%p262) target = $region44
        $region43: #{tpu_custom_call.1} parent=39 // pred_region
          %265 = dma.done %s258, 128
        $region44: #{tpu_custom_call.1} parent=39 // pred_fallthru
          _
        %s266 = sand.u32 %s113, 1
        %s267 = scalar_lea.sflag [#allocation7], %s266
        %s268 = sand.u32 %s113, 1
        %s269 = smul.addr %s268, 16
        %s270 = scalar_lea.vmem [#allocation6], %s269
        // Predicated region
        $region45: #{tpu_custom_call.1} parent=39 // pred_check
          %p271 = pneg %p126
        $region46: #{tpu_custom_call.1} parent=39 // pred_check_branch
          %273 = sbr.rel (%p271) target = $region48
        $region47: #{tpu_custom_call.1} parent=39 // pred_region
          %274 = dma.done %s267, 256
        $region48: #{tpu_custom_call.1} parent=39 // pred_fallthru
          _
        %s275 = sand.u32 %s45, 1
        %s276 = scalar_lea.sflag [#allocation4], %s275
        %s277 = sand.u32 %s45, 1
        %s278 = smul.addr %s277, 8
        %s279 = scalar_lea.vmem [#allocation3], %s278
        %p280 = pneg %p58
        %p281 = pneg %p55
        %p282 = pneg %p79
        %p283 = pneg %p76
        %p284 = pneg %p100
        %p285 = pneg %p97
        %s286 = sand.u32 %s113, 1
        %s287 = scalar_lea.sflag [#allocation7], %s286
        %s288 = sand.u32 %s113, 1
        %s289 = smul.addr %s288, 16
        %s290 = scalar_lea.vmem [#allocation6], %s289
        %p291 = pneg %p126
        %p292 = pneg %p123
        %p293 = scmp.lt.s32.totalorder %s30, 2
        %s294 = scalar_select %p293, %s30, 2
        %s295 = scalar_lea.vmem %s4, %s294
        %p296 = pneg %p152
        %p297 = pneg %p149
        %p298 = pneg %p180
        %p299 = pneg %p177
        %s300 = sand.u32 %s167, 1
        %s301 = scalar_lea.sflag [#allocation5], %s300
        %s302 = sand.u32 %s167, 1
        %s303 = smul.addr %s302, 4
        %s304 = scalar_lea.vmem [#allocation8], %s303
        %p305 = scmp.lt.s32.totalorder %s30, 2
        %s306 = scalar_select %p305, %s30, 2
        %s307 = scalar_lea.vmem %s4, %s306
        %p309 = scmp.eq.s32.totalorder %s30, 0
        // Predicated region
        $region49: #{tpu_custom_call.1} parent=39 // pred_check
          %p310 = pneg %p309
        $region50: #{tpu_custom_call.1} parent=39 // pred_check_branch
          %312 = sbr.rel (%p310) target = $region52
        $region51: #{tpu_custom_call.1} parent=39 // pred_region
          %v313 = vld [vmem:[%s261] sm:$0xff]
          %vm314 = vcmask 261120
          %v315 = vsel %vm314, %v313, 0.0
          %316 = vadd.xlane.f32.xlu0 %v315
          %v317 = vpop.xlane.xlu0 %316
          %v318 = vrcp.pop 32.0
          %v319 = vmul.f32 %v317, %v318
          %v320 = vsub.f32 %v313, %v319
          %v321 = vmul.f32 %v320, %v320
          %v322 = vsel %vm314, %v321, 0.0
          %323 = vadd.xlane.f32.xlu0 %v322
          %v324 = vpop.xlane.xlu0 %323
          %v325 = vmul.f32 %v324, %v318
          %v326 = vadd.f32 %v325, 1e-05
          %v327 = vrsqrt.pop %v326
          %v328 = vmul.f32 %v320, %v327
          %v329 = vld [vmem:[%s1] sm:$0x1]
          %v331 = vlaneseq
          %v332 = vshrl.u32 %v331, 7
          %v333 = vsub.s32 0, %v332
          %v334 = vrot.slane %v329, %v333
          %v336 = vmul.f32 %v328, %v334
          %v337 = vld [vmem:[%s2] sm:$0x1]
          %v339 = vlaneseq
          %v340 = vshrl.u32 %v339, 7
          %v341 = vsub.s32 0, %v340
          %v342 = vrot.slane %v337, %v341
          %v344 = vadd.f32 %v336, %v342
          %v345 = vpack.c.bf16 %v344, %v344
          %vm346 = vcmask 257024
          %347 = vst.msk [vmem:[#allocation2] sm:$0xf] %vm346, %v345
        $region52: #{tpu_custom_call.1} parent=39 // pred_fallthru
          _
        %v348 = vld [vmem:[#allocation2] sm:$0xf]
        %v349 = vld [vmem:[%s270] sm:$0xf]
        %v350 = vld [vmem:[%s270 + $0x4] sm:$0xf]
        %v351 = vld [vmem:[%s270 + $0x8] sm:$0xf]
        %v352 = vld [vmem:[%s270 + $0xc] sm:$0xf]
        %v353 = vld [vmem:[%s307] sm:$0x1]
        %v355 = vlaneseq
        %v356 = vshrl.u32 %v355, 7
        %v357 = vsub.s32 0, %v356
        %v358 = vrot.slane %v353, %v357
        %v364 = vunpack.c.l.b16 %v349
        %v365 = vunpack.c.l.b16 %v350
        %v366 = vunpack.c.l.b16 %v351
        %v367 = vunpack.c.l.b16 %v352
        %v368 = vpack.c.b16 %v365, %v364
        %v369 = vpack.c.b16 %v367, %v366
        %vm372 = vcmask 261120
        %v374 = vsel %vm372, %v348, 0
        %376 = vmatprep.subr.bf16.mxu0 0
        %377 = vmatpush1.bf16.msra.mxu0 0
        %378 = vmatprep.subr.bf16.mxu0 0
        %379 = vmatpush1.bf16.msra.mxu0 0
        %380 = vmatprep.subr.bf16.mxu0 0
        %381 = vmatpush1.bf16.msra.mxu0 0
        %382 = vmatprep.subr.bf16.mxu0 0
        %383 = vmatpush1.bf16.msra.mxu0 0
        %384 = vmatprep.subr.bf16.mxu0 0
        %385 = vmatpush1.bf16.msra.mxu0 0
        %386 = vmatprep.subr.bf16.mxu0 0
        %387 = vmatpush1.bf16.msra.mxu0 0
        %388 = vmatprep.subr.bf16.mxu0 0
        %389 = vmatpush1.bf16.msra.mxu0 %v369
        %390 = vmatprep.subr.bf16.mxu0 0
        %391 = vmatpush1.bf16.msra.mxu0 %v368
        %392 = vmatprep.subr.bf16.mxu0 0
        %393 = vmatpush2.bf16.msra.mxu0 0
        %394 = vmatprep.subr.bf16.mxu0 0
        %395 = vmatpush2.bf16.msra.mxu0 0
        %396 = vmatprep.subr.bf16.mxu0 0
        %397 = vmatpush2.bf16.msra.mxu0 0
        %398 = vmatprep.subr.bf16.mxu0 0
        %399 = vmatpush2.bf16.msra.mxu0 0
        %400 = vmatprep.subr.bf16.mxu0 0
        %401 = vmatpush2.bf16.msra.mxu0 0
        %402 = vmatprep.subr.bf16.mxu0 0
        %403 = vmatpush2.bf16.msra.mxu0 0
        %404 = vmatprep.subr.bf16.mxu0 0
        %405 = vmatpush2.bf16.msra.mxu0 0
        %406 = vmatprep.subr.bf16.mxu0 0
        %407 = vmatpush2.bf16.msra.mxu0 0
        %408 = vmatprep.mubr.bf16.mxu0 0
        %409 = vmatmul.mubr.bf16.gmra.mxu0 %v374
        %v410 = vpop.f32.mrf.mxu0
        %v411 = vadd.f32 %v358, %v410
        %v412 = vpop.f32.mrf.mxu0
        %v413 = vpop.f32.mrf.mxu0
        %v414 = vpop.f32.mrf.mxu0
        %415 = vdwg.mxu0
        %v416 = vpack.c.bf16 %v411, %v411
        %vm417 = vcmask 257024
        %418 = vst.msk [vmem:[%s304] sm:$0xf] %vm417, %v416
        %s419 = sand.u32 %s167, 1
        %s420 = scalar_lea.sflag [#allocation5], %s419
        %s421 = sand.u32 %s167, 1
        %s422 = smul.addr %s421, 4
        %s423 = scalar_lea.vmem [#allocation8], %s422
        // Predicated region
        $region53: #{tpu_custom_call.1} parent=39 // pred_check
          %p424 = pneg %p177
        $region54: #{tpu_custom_call.1} parent=39 // pred_check_branch
          %426 = sbr.rel (%p424) target = $region56
        $region55: #{tpu_custom_call.1} parent=39 // pred_region
          %s428 = ssub.s32 64, 64
          %429 = vsyncadd %s420, %s428
          %s430 = smul.addr %s30, 2
          %s431 = sadd.s32 %s29, %s430
          %s432 = smul.addr %s431, 64
          %s433 = scalar_lea.hbm %s5, %s432
          %s435 = sshll.u32 %s423, 4
          %s436 = int_to_ptr.vmem [resolvable:$true] %s435
          %438 = dma.vmem_to_hbm [thread:$0]  %s436, 64, %s433, %s420
        $region56: #{tpu_custom_call.1} parent=39 // pred_fallthru
          _
      $region40: #{tpu_custom_call.1} parent=5 // pred_fallthru
        _
      %p439 = scmp.le.s32.totalorder 2, %s20
      // Predicated region
      $region57: #{tpu_custom_call.1} parent=5 // pred_check
        %p440 = pneg %p439
      $region58: #{tpu_custom_call.1} parent=5 // pred_check_branch
        %442 = sbr.rel (%p440) target = $region60
      $region59: #{tpu_custom_call.1} parent=5 // pred_region
        %s443 = ssub.s32 %s20, 2
        // Predicated region
        $region61: #{tpu_custom_call.1} parent=59 // pred_check
          %p444 = pneg %p183
        $region62: #{tpu_custom_call.1} parent=59 // pred_check_branch
          %446 = sbr.rel (%p444) target = $region64
        $region63: #{tpu_custom_call.1} parent=59 // pred_region
          %s447 = sand.u32 %s168, 1
          %s448 = scalar_lea.sflag [#allocation5], %s447
          %s449 = sand.u32 %s168, 1
          %s450 = smul.addr %s449, 4
          %s451 = scalar_lea.vmem [#allocation8], %s450
          %452 = dma.done %s448, 64
        $region64: #{tpu_custom_call.1} parent=59 // pred_fallthru
          _
      $region60: #{tpu_custom_call.1} parent=5 // pred_fallthru
        _
    $region6: #{tpu_custom_call.1} parent=1 // loop_footer
      %s24 = sadd.s32 1, %s20
    $region7: #{tpu_custom_call.1} parent=1 // loop_footer_branch
      %19 = sbr.rel target = $region3
    $region8: #{tpu_custom_call.1} parent=1 // loop_exit
      _
    %453 = vsyncpa [#allocation4], 1
    %s454 = scalar_lea.sflag [#allocation4], 1
    %455 = vsyncpa %s454, 1
    %456 = vsyncpa [#allocation7], 1
    %s457 = scalar_lea.sflag [#allocation7], 1
    %458 = vsyncpa %s457, 1
    %459 = vsyncpa [#allocation5], 1
    %s460 = scalar_lea.sflag [#allocation5], 1
    %461 = vsyncpa %s460, 1

</llo_original>
